<compile_context>
chip_gen: v6e
topology: v6e:2x2x1
jax: 0.10.0
libtpu: 0.0.40
codegen_flags: <defaults>
</compile_context>

<pallas_src>
import jax
import jax.numpy as jnp
from jax.experimental import pallas as pl
from jax.experimental.pallas import tpu as pltpu


# ---------------------------------------------------------------------------
# Kernels
# ---------------------------------------------------------------------------
def _inv_col_norm_kernel(w_ref, inv_ref):
    """inv[0, d] = 1 / ||W[:, d]||_2  (rsqrt of per-column sum of squares)."""
    w = w_ref[...]                                            # (C, D) f32
    inv_ref[...] = jax.lax.rsqrt(jnp.sum(w * w, axis=0, keepdims=True))


def _scaled_linear_kernel(x_ref, w_ref, inv_ref, b_ref, o_ref):
    """o = (x * inv_norm) @ W.T + b, with the contraction over D (no transpose)."""
    xs = x_ref[...] * inv_ref[...]                            # (tB, D) * (1, D)
    acc = jax.lax.dot_general(
        xs, w_ref[...],
        dimension_numbers=(((1,), (1,)), ((), ())),           # contract D with D
        preferred_element_type=jnp.float32)                   # (tB, tC)
    o_ref[...] = acc + b_ref[...]                             # bias broadcast (1, tC)


def _linear_kernel(x_ref, w_ref, b_ref, o_ref):
    """o = x @ W.T + b (norm_flag=False path)."""
    acc = jax.lax.dot_general(
        x_ref[...], w_ref[...],
        dimension_numbers=(((1,), (1,)), ((), ())),
        preferred_element_type=jnp.float32)
    o_ref[...] = acc + b_ref[...]


# ---------------------------------------------------------------------------
# Wrapper
# ---------------------------------------------------------------------------
def _pick_tile(n, preferred):
    """Largest preferred tile that divides n, else the full extent (always legal)."""
    for t in preferred:
        if n % t == 0 and n >= t:
            return t
    return n


def classifier_forward(x, weight, bias, norm_flag=True):
    """x: [B, D] f32, weight: [C, D] f32, bias: [C] f32 -> [B, C] f32."""
    x = x.astype(jnp.float32)
    weight = weight.astype(jnp.float32)
    B, D = x.shape
    C, D2 = weight.shape
    assert D == D2, "in_channels mismatch"
    bias2d = bias.reshape(1, C).astype(jnp.float32)

    # Tile sizes: lane-dense (multiples of 128/256) when shapes allow,
    # otherwise full-array single block (toy shapes).
    tB = _pick_tile(B, (256, 128))
    tC = _pick_tile(C, (256, 128))
    nB, nC = B // tB, C // tC
    # D (in_channels) is kept resident per tile — fine for classifier-sized D.
    # TODO(synk): add a D-reduction grid axis + f32 accumulator for very large D.

    if norm_flag:
        # One-shot per-column inverse-norm (cross-sublane reduce over the class
        # axis), computed once and fed to every matmul tile.
        inv = pl.pallas_call(
            _inv_col_norm_kernel,
            out_shape=jax.ShapeDtypeStruct((1, D), jnp.float32),
            grid=(1,),
            in_specs=[pl.BlockSpec((C, D), lambda i: (0, 0))],
            out_specs=pl.BlockSpec((1, D), lambda i: (0, 0)),
        )(weight)

    # Grid: C-tiles outer, B-tiles inner, so the weight tile (the bandwidth
    # consumer) and bias tile stay resident across the inner batch loop.
    in_specs = [
        pl.BlockSpec((tB, D), lambda c, b: (b, 0)),      # x tile
        pl.BlockSpec((tC, D), lambda c, b: (c, 0)),      # weight tile (resident over b)
    ]
    args = [x, weight]
    if norm_flag:
        in_specs.append(pl.BlockSpec((1, D), lambda c, b: (0, 0)))   # inv_norm, resident
        args.append(inv)
    in_specs.append(pl.BlockSpec((1, tC), lambda c, b: (0, c)))      # bias, resident over b
    args.append(bias2d)

    kernel = _scaled_linear_kernel if norm_flag else _linear_kernel

    return pl.pallas_call(
        kernel,
        out_shape=jax.ShapeDtypeStruct((B, C), jnp.float32),
        grid=(nC, nB),
        in_specs=in_specs,
        out_specs=pl.BlockSpec((tB, tC), lambda c, b: (b, c)),
        compiler_params=pltpu.CompilerParams(
            dimension_semantics=("parallel", "parallel")),
    )(*args)


# ---------------------------------------------------------------------------
# Demo / correctness check
# ---------------------------------------------------------------------------
if __name__ == "__main__":
    # Small shapes consistent with the module: in_channels=32, num_classes=2, batch=4.
    B, D, C = 4, 32, 2
    key = jax.random.PRNGKey(0)
    kx, kw = jax.random.split(key)

    # Deterministic parameter init matching __init__: weight ~ N(0, 0.01), bias = 0.
    weight = 0.01 * jax.random.normal(kw, (C, D), dtype=jnp.float32)
    bias = jnp.zeros((C,), dtype=jnp.float32)
    x = jax.random.normal(kx, (B, D), dtype=jnp.float32)

    out = jax.block_until_ready(classifier_forward(x, weight, bias, norm_flag=True))

    # Pure-JAX reference, written exactly as the PyTorch module does it.
    norm = jnp.sqrt(jnp.sum(weight * weight, axis=0, keepdims=True))
    w_n = weight / norm
    ref = jnp.dot(x, w_n.T, precision=jax.lax.Precision.HIGHEST) + bias
    assert jnp.allclose(out, ref, atol=1e-4, rtol=1e-5), "mismatch vs reference (norm)"

    # norm_flag=False path.
    out2 = jax.block_until_ready(classifier_forward(x, weight, bias, norm_flag=False))
    ref2 = jnp.dot(x, weight.T, precision=jax.lax.Precision.HIGHEST) + bias
    assert jnp.allclose(out2, ref2, atol=1e-4, rtol=1e-5), "mismatch vs reference (no norm)"

    print("KERNEL_OK")
</pallas_src>

<mosaic_0001>
module attributes {stable_mosaic.version = 11 : i64} {
  func.func @_inv_col_norm_kernel(%arg0: i32, %arg1: memref<2x32xf32, #tpu.memory_space<vmem>>, %arg2: memref<1x32xf32, #tpu.memory_space<vmem>>) attributes {dimension_semantics = [#tpu.dimension_semantics<arbitrary>], iteration_bounds = array<i64: 1>, scalar_prefetch = 0 : i64, scratch_operands = 0 : i64, tpu.core_type = #tpu.core_type<tc>, window_params = [{pipeline_mode = #tpu.pipeline_mode<synchronous>, transform_indices = @transform_0, window_bounds = array<i64: 2, 32>}, {pipeline_mode = #tpu.pipeline_mode<synchronous>, transform_indices = @transform_1, window_bounds = array<i64: 1, 32>}]} {
    %c0 = arith.constant 0 : index
    %c0_0 = arith.constant 0 : index
    %0 = vector.load %arg1[%c0, %c0_0] : memref<2x32xf32, #tpu.memory_space<vmem>>, vector<2x32xf32>
    %1 = arith.mulf %0, %0 : vector<2x32xf32>
    %cst = arith.constant dense<0.000000e+00> : vector<32xf32>
    %2 = vector.multi_reduction <add>, %1, %cst [0] : vector<2x32xf32> to vector<32xf32>
    %3 = vector.shape_cast %2 : vector<32xf32> to vector<1x32xf32>
    %4 = math.rsqrt %3 : vector<1x32xf32>
    %c0_1 = arith.constant 0 : index
    %c0_2 = arith.constant 0 : index
    %5 = vector.load %arg2[%c0_1, %c0_2] : memref<1x32xf32, #tpu.memory_space<vmem>>, vector<1x32xf32>
    tpu.vector_store %arg2[%c0_1, %c0_2], %4 {strides = array<i32>} : memref<1x32xf32, #tpu.memory_space<vmem>>, vector<1x32xf32>,
    return
  }
  func.func @transform_0(%arg0: i32) -> (i32, i32) {
    %c0_i32 = arith.constant 0 : i32
    %c0_i32_0 = arith.constant 0 : i32
    %c0_i32_1 = arith.constant 0 : i32
    return %c0_i32, %c0_i32_0 : i32, i32
  }
  func.func @transform_1(%arg0: i32) -> (i32, i32) {
    %c0_i32 = arith.constant 0 : i32
    %c0_i32_0 = arith.constant 0 : i32
    %c0_i32_1 = arith.constant 0 : i32
    return %c0_i32, %c0_i32_0 : i32, i32
  }
}

</mosaic_0001>

<llo_original>
// kernel: tpu_custom_call.1
$region0: #{tpu_custom_call.1}
  #allocation0 [shape = 'u32[]', space=smem, size = 0x4, offset = 0x4, fixed_abs, tag = 'smem constant byte address 0x4 - core index']
  #allocation1 [shape = 'u32[144,128]{1,0:T(1,128)}', space=vmem, size = 0x12000, scoped, tag = 'internal scratch']
  %s0 = inlined_call_operand.hbm [shape: f32[2,32], index: 0, kind: input, shape index: {}]
  %s1 = inlined_call_operand.hbm [shape: f32[1,32], index: 1, kind: output, shape index: {}]
  %s2 = sld [smem:[#allocation0]]
  $region18: #{tpu_custom_call.1} parent=0
    _
  %s4 = ssub.s32 1, %s2
  %s5 = scalar_select 0, %s4, %s2
  $region1: #{tpu_custom_call.1} parent=0
    #allocation2 [shape = 'u8[1024]{0}', space=vmem, size = 0x400, scoped, tag = 'input window, operand 0, single buffered']
    #allocation3 [shape = 's32[1]{0}', space=sflag, size = 0x4, scoped, tag = 'scoped memory for tpu_custom_call.1']
    #allocation4 [shape = 's32[1]{0}', space=sflag, size = 0x4, scoped, tag = 'scoped memory for tpu_custom_call.1']
    #allocation5 [shape = 'u8[512]{0}', space=vmem, size = 0x400, scoped, tag = 'output window, operand 0, single buffered']
    %6 = vsyncpa [#allocation3], 0
    %7 = vsyncpa [#allocation4], 0
    // Predicated region
    $region2: #{tpu_custom_call.1} parent=1 // pred_check
      _
    $region3: #{tpu_custom_call.1} parent=1 // pred_check_branch
      %9 = sbr.rel (0) target = $region5
    $region4: #{tpu_custom_call.1} parent=1 // pred_region
      %s11 = ssub.s32 32, 32
      %12 = vsyncadd [#allocation3], %s11
      %s14 = sshll.u32 [#allocation2], 4
      %s15 = int_to_ptr.vmem [resolvable:$true] %s14
      %17 = dma.hbm_to_vmem [thread:$0]  %s0, 32, %s15, [#allocation3]
    $region5: #{tpu_custom_call.1} parent=1 // pred_fallthru
      _
    // Predicated region
    $region6: #{tpu_custom_call.1} parent=1 // pred_check
      _
    $region7: #{tpu_custom_call.1} parent=1 // pred_check_branch
      %19 = sbr.rel (0) target = $region9
    $region8: #{tpu_custom_call.1} parent=1 // pred_region
      %20 = dma.done [#allocation3], 32
    $region9: #{tpu_custom_call.1} parent=1 // pred_fallthru
      _
    %v21 = vld [vmem:[#allocation2] sm:$0x3]
    %v22 = vmul.f32 %v21, %v21
    %vm23 = vcmask 254976
    %v24 = vsel %vm23, %v22, 0.0
    %v25 = vrot.slane %v24, 4
    %v26 = vadd.f32 %v24, %v25
    %v27 = vrot.slane %v26, 2
    %v28 = vadd.f32 %v26, %v27
    %v29 = vrot.slane %v28, 1
    %v30 = vadd.f32 %v28, %v29
    %v31 = vrsqrt.pop %v30
    %vm32 = vcmask 253952
    %33 = vst.msk [vmem:[#allocation5] sm:$0x1] %vm32, %v31
    // Predicated region
    $region10: #{tpu_custom_call.1} parent=1 // pred_check
      _
    $region11: #{tpu_custom_call.1} parent=1 // pred_check_branch
      %35 = sbr.rel (0) target = $region13
    $region12: #{tpu_custom_call.1} parent=1 // pred_region
      %s37 = ssub.s32 16, 16
      %38 = vsyncadd [#allocation4], %s37
      %s40 = sshll.u32 [#allocation5], 4
      %s41 = int_to_ptr.vmem [resolvable:$true] %s40
      %43 = dma.vmem_to_hbm [thread:$0]  %s41, 16, %s1, [#allocation4]
    $region13: #{tpu_custom_call.1} parent=1 // pred_fallthru
      _
    // Predicated region
    $region14: #{tpu_custom_call.1} parent=1 // pred_check
      _
    $region15: #{tpu_custom_call.1} parent=1 // pred_check_branch
      %45 = sbr.rel (0) target = $region17
    $region16: #{tpu_custom_call.1} parent=1 // pred_region
      %46 = dma.done [#allocation4], 16
    $region17: #{tpu_custom_call.1} parent=1 // pred_fallthru
      _
    %47 = vsyncpa [#allocation3], 1
    %48 = vsyncpa [#allocation4], 1

</llo_original>
